<compile_context>
chip_gen: v7x
topology: tpu7x:2x2x1
jax: 0.10.0
libtpu: 0.0.40
codegen_flags: <defaults>
</compile_context>

<pallas_src>
import functools

import jax
import jax.numpy as jnp
from jax import lax
from jax.experimental import pallas as pl
from jax.experimental.pallas import tpu as pltpu

C1 = 0.01 ** 2
C2 = 0.03 ** 2

LANES = 128
SUB = 8
VREG = SUB * LANES  # 1024 elements per (8,128) slab


def _ssim_stats_kernel(x_ref, y_ref, o_ref, *, b, tile_g, blocks_per_half,
                       groups_total, needs_mask):
    """Accumulate lane-dense partial sums of (x, y, x^2, y^2, x*y).

    x_ref, y_ref: (b, tile_g, 8, 128) input tiles.
    o_ref:        (5*b, 8, 128) resident accumulator (one (b,8,128) slab per
                  statistic), written back per parallel-axis index.
    """
    p = pl.program_id(0)
    k = pl.program_id(1)

    @pl.when(k == 0)
    def _():
        o_ref[...] = jnp.zeros_like(o_ref)

    x = x_ref[...].astype(jnp.float32)  # (b, tile_g, 8, 128)
    y = y_ref[...].astype(jnp.float32)

    if needs_mask:
        # Logical (unclamped) block id; zero out groups past the true end.
        blk = p * blocks_per_half + k
        groups_left = groups_total - blk * tile_g
        gids = lax.broadcasted_iota(jnp.int32, (1, tile_g, SUB, LANES), 1)
        keep = gids < groups_left
        x = jnp.where(keep, x, 0.0)
        y = jnp.where(keep, y, 0.0)

    # Fold the group axis with pure VPU adds; one unmasked (b,8,128) store per
    # statistic per step.  The single cross-lane reduce happens in the JAX
    # epilogue, not here.
    o_ref[0 * b:1 * b] += jnp.sum(x, axis=1)
    o_ref[1 * b:2 * b] += jnp.sum(y, axis=1)
    o_ref[2 * b:3 * b] += jnp.sum(x * x, axis=1)
    o_ref[3 * b:4 * b] += jnp.sum(y * y, axis=1)
    o_ref[4 * b:5 * b] += jnp.sum(x * y, axis=1)


def ssim_v0(x, y, *, target_block_bytes=4 * 1024 * 1024):
    """SSIM_v0 forward. x, y: (B, C, H, W) arrays -> (B,) float32."""
    assert x.shape == y.shape
    b = x.shape[0]
    n = 1
    for d in x.shape[1:]:
        n *= d

    xf = jnp.reshape(x, (b, n))
    yf = jnp.reshape(y, (b, n))

    # Fold the reduction axis into full (8,128) slabs. Padding (an extra HBM
    # pass) only happens in the uncommon non-multiple-of-1024 case; padded
    # zeros do not change any of the accumulated sums.
    n_pad = pl.cdiv(n, VREG) * VREG
    if n_pad != n:
        xf = jnp.pad(xf, ((0, 0), (0, n_pad - n)))
        yf = jnp.pad(yf, ((0, 0), (0, n_pad - n)))
    groups_total = n_pad // VREG

    x4 = xf.reshape(b, groups_total, SUB, LANES)
    y4 = yf.reshape(b, groups_total, SUB, LANES)

    # Large lane/sublane-dense blocks: ~target_block_bytes per input per step.
    # 2 inputs x 2 pipeline buffers stays well inside the 32 MiB scoped-VMEM
    # budget below on v5e / v6e / v7x.  (For extremely large B the minimum
    # tile_g=1 block may exceed the target; typical SSIM batches are fine.)
    itemsize = x4.dtype.itemsize
    tile_g = max(1, target_block_bytes // (b * VREG * itemsize))
    tile_g = min(tile_g, groups_total)

    n_blocks = pl.cdiv(groups_total, tile_g)
    blocks_per_half = pl.cdiv(n_blocks, 2)   # leading "parallel" axis (v7x: 2 TCs)
    needs_mask = (2 * blocks_per_half * tile_g) != groups_total

    def in_map(p, k):
        # Clamp virtual trailing blocks (odd block count) onto the last real
        # block; their contribution is masked to zero inside the kernel.
        return (0, jnp.minimum(p * blocks_per_half + k, n_blocks - 1), 0, 0)

    kernel = functools.partial(
        _ssim_stats_kernel, b=b, tile_g=tile_g,
        blocks_per_half=blocks_per_half, groups_total=groups_total,
        needs_mask=needs_mask)

    stats = pl.pallas_call(
        kernel,
        out_shape=jax.ShapeDtypeStruct((2 * 5 * b, SUB, LANES), jnp.float32),
        grid_spec=pltpu.PrefetchScalarGridSpec(
            num_scalar_prefetch=0,
            grid=(2, blocks_per_half),
            in_specs=[
                pl.BlockSpec((b, tile_g, SUB, LANES), in_map),
                pl.BlockSpec((b, tile_g, SUB, LANES), in_map),
            ],
            out_specs=pl.BlockSpec((5 * b, SUB, LANES), lambda p, k: (p, 0, 0)),
        ),
        compiler_params=pltpu.CompilerParams(
            dimension_semantics=("parallel", "arbitrary"),
            vmem_limit_bytes=32 * 1024 * 1024,
        ),
        cost_estimate=pl.CostEstimate(
            flops=8 * b * n,
            transcendentals=0,
            bytes_accessed=2 * b * n * itemsize + 2 * 5 * b * VREG * 4,
        ),
    )(x4, y4)

    # Tiny O(B) epilogue: combine per-core / per-sublane / per-lane partial
    # sums and evaluate the SSIM formula (torch: unbiased var, biased cov).
    sums = stats.reshape(2, 5, b, VREG).sum(axis=(0, 3))  # (5, B) float32
    sum_x, sum_y, sum_xx, sum_yy, sum_xy = (sums[i] for i in range(5))
    nf = jnp.float32(n)
    mu_x = sum_x / nf
    mu_y = sum_y / nf
    var_x = (sum_xx - nf * mu_x * mu_x) / (nf - 1.0)
    var_y = (sum_yy - nf * mu_y * mu_y) / (nf - 1.0)
    cov = sum_xy / nf - mu_x * mu_y
    ssim_num = (2.0 * mu_x * mu_y + C1) * (2.0 * cov + C2)
    ssim_den = (mu_x * mu_x + mu_y * mu_y + C1) * (var_x + var_y + C2)
    return (ssim_num / ssim_den + 1.0) * 0.5


def _ssim_ref(x, y):
    """Pure-JAX reference matching the PyTorch module."""
    b = x.shape[0]
    xf = x.reshape(b, -1).astype(jnp.float32)
    yf = y.reshape(b, -1).astype(jnp.float32)
    n = xf.shape[1]
    mu_x = jnp.mean(xf, axis=1)
    mu_y = jnp.mean(yf, axis=1)
    var_x = jnp.var(xf, axis=1) * n / (n - 1)  # unbiased, as torch.var
    var_y = jnp.var(yf, axis=1) * n / (n - 1)
    cov = jnp.mean(xf * yf, axis=1) - mu_x * mu_y
    num = (2 * mu_x * mu_y + C1) * (2 * cov + C2)
    den = (mu_x ** 2 + mu_y ** 2 + C1) * (var_x + var_y + C2)
    return (num / den + 1.0) / 2.0


if __name__ == "__main__":
    key = jax.random.PRNGKey(0)
    kx, ky = jax.random.split(key)
    B, C, H, W = 2, 4, 16, 16
    x = jax.random.uniform(kx, (B, C, H, W), dtype=jnp.float32)
    # y correlated with x so SSIM is not degenerate.
    y = 0.8 * x + 0.2 * jax.random.uniform(ky, (B, C, H, W), dtype=jnp.float32)

    out = jax.block_until_ready(ssim_v0(x, y))
    ref = _ssim_ref(x, y)

    assert out.shape == (B,)
    assert jnp.allclose(out, ref, rtol=5e-5, atol=1e-6), (out, ref)
    print("KERNEL_OK")
</pallas_src>

<mosaic_0001>
module attributes {stable_mosaic.version = 11 : i64} {
  func.func @_ssim_stats_kernel(%arg0: i32, %arg1: i32, %arg2: memref<2x1x8x128xf32, #tpu.memory_space<vmem>>, %arg3: memref<2x1x8x128xf32, #tpu.memory_space<vmem>>, %arg4: memref<10x8x128xf32, #tpu.memory_space<vmem>>) attributes {dimension_semantics = [#tpu.dimension_semantics<parallel>, #tpu.dimension_semantics<arbitrary>], iteration_bounds = array<i64: 2, 1>, scalar_prefetch = 0 : i64, scratch_operands = 0 : i64, tpu.core_type = #tpu.core_type<tc>, window_params = [{transform_indices = @transform_0, window_bounds = array<i64: 2, 1, 8, 128>}, {transform_indices = @transform_1, window_bounds = array<i64: 2, 1, 8, 128>}, {transform_indices = @transform_2, window_bounds = array<i64: 10, 8, 128>}]} {
    %c0_i32 = arith.constant 0 : i32
    %0 = arith.cmpi eq, %arg1, %c0_i32 : i32
    %1 = arith.extui %0 : i1 to i32
    %c0_i32_0 = arith.constant 0 : i32
    %2 = arith.cmpi ne, %1, %c0_i32_0 : i32
    scf.if %2 {
      %cst_42 = arith.constant 0.000000e+00 : f32
      %43 = vector.broadcast %cst_42 : f32 to vector<10x8x128xf32>
      %c0_43 = arith.constant 0 : index
      %c0_44 = arith.constant 0 : index
      %c0_45 = arith.constant 0 : index
      %44 = vector.load %arg4[%c0_43, %c0_44, %c0_45] : memref<10x8x128xf32, #tpu.memory_space<vmem>>, vector<10x8x128xf32>
      tpu.vector_store %arg4[%c0_43, %c0_44, %c0_45], %43 {strides = array<i32>} : memref<10x8x128xf32, #tpu.memory_space<vmem>>, vector<10x8x128xf32>,
    } else {
    }
    %c0 = arith.constant 0 : index
    %c0_1 = arith.constant 0 : index
    %c0_2 = arith.constant 0 : index
    %c0_3 = arith.constant 0 : index
    %3 = vector.load %arg2[%c0, %c0_1, %c0_2, %c0_3] : memref<2x1x8x128xf32, #tpu.memory_space<vmem>>, vector<2x1x8x128xf32>
    %c0_4 = arith.constant 0 : index
    %c0_5 = arith.constant 0 : index
    %c0_6 = arith.constant 0 : index
    %c0_7 = arith.constant 0 : index
    %4 = vector.load %arg3[%c0_4, %c0_5, %c0_6, %c0_7] : memref<2x1x8x128xf32, #tpu.memory_space<vmem>>, vector<2x1x8x128xf32>
    %c1_i32 = arith.constant 1 : i32
    %5 = arith.muli %arg0, %c1_i32 : i32
    %6 = arith.addi %5, %arg1 : i32
    %c1_i32_8 = arith.constant 1 : i32
    %7 = arith.muli %6, %c1_i32_8 : i32
    %c1_i32_9 = arith.constant 1 : i32
    %8 = arith.subi %c1_i32_9, %7 : i32
    %9 = tpu.iota {dimensions = array<i32: 1>} : vector<1x1x8x128xi32>
    %10 = vector.broadcast %8 : i32 to vector<1x1x8x128xi32>
    %11 = arith.cmpi slt, %9, %10 : vector<1x1x8x128xi32>
    %cst = arith.constant 0.000000e+00 : f32
    %12 = vector.shape_cast %11 : vector<1x1x8x128xi1> to vector<1x1x8x128xi1>
    %13 = vector.broadcast %12 : vector<1x1x8x128xi1> to vector<2x1x8x128xi1>
    %14 = vector.broadcast %cst : f32 to vector<2x1x8x128xf32>
    %15 = arith.select %13, %3, %14 : vector<2x1x8x128xi1>, vector<2x1x8x128xf32>
    %cst_10 = arith.constant 0.000000e+00 : f32
    %16 = vector.shape_cast %11 : vector<1x1x8x128xi1> to vector<1x1x8x128xi1>
    %17 = vector.broadcast %16 : vector<1x1x8x128xi1> to vector<2x1x8x128xi1>
    %18 = vector.broadcast %cst_10 : f32 to vector<2x1x8x128xf32>
    %19 = arith.select %17, %4, %18 : vector<2x1x8x128xi1>, vector<2x1x8x128xf32>
    %c0_11 = arith.constant 0 : index
    %c0_12 = arith.constant 0 : index
    %c0_13 = arith.constant 0 : index
    %20 = vector.load %arg4[%c0_11, %c0_12, %c0_13] : memref<10x8x128xf32, #tpu.memory_space<vmem>>, vector<2x8x128xf32>
    %cst_14 = arith.constant dense<0.000000e+00> : vector<2x8x128xf32>
    %21 = vector.multi_reduction <add>, %15, %cst_14 [1] : vector<2x1x8x128xf32> to vector<2x8x128xf32>
    %22 = arith.addf %20, %21 : vector<2x8x128xf32>
    %c0_15 = arith.constant 0 : index
    %c0_16 = arith.constant 0 : index
    %c0_17 = arith.constant 0 : index
    %23 = vector.load %arg4[%c0_15, %c0_16, %c0_17] : memref<10x8x128xf32, #tpu.memory_space<vmem>>, vector<2x8x128xf32>
    tpu.vector_store %arg4[%c0_15, %c0_16, %c0_17], %22 {strides = array<i32>} : memref<10x8x128xf32, #tpu.memory_space<vmem>>, vector<2x8x128xf32>,
    %c2 = arith.constant 2 : index
    %c0_18 = arith.constant 0 : index
    %c0_19 = arith.constant 0 : index
    %24 = vector.load %arg4[%c2, %c0_18, %c0_19] : memref<10x8x128xf32, #tpu.memory_space<vmem>>, vector<2x8x128xf32>
    %cst_20 = arith.constant dense<0.000000e+00> : vector<2x8x128xf32>
    %25 = vector.multi_reduction <add>, %19, %cst_20 [1] : vector<2x1x8x128xf32> to vector<2x8x128xf32>
    %26 = arith.addf %24, %25 : vector<2x8x128xf32>
    %c2_21 = arith.constant 2 : index
    %c0_22 = arith.constant 0 : index
    %c0_23 = arith.constant 0 : index
    %27 = vector.load %arg4[%c2_21, %c0_22, %c0_23] : memref<10x8x128xf32, #tpu.memory_space<vmem>>, vector<2x8x128xf32>
    tpu.vector_store %arg4[%c2_21, %c0_22, %c0_23], %26 {strides = array<i32>} : memref<10x8x128xf32, #tpu.memory_space<vmem>>, vector<2x8x128xf32>,
    %c4 = arith.constant 4 : index
    %c0_24 = arith.constant 0 : index
    %c0_25 = arith.constant 0 : index
    %28 = vector.load %arg4[%c4, %c0_24, %c0_25] : memref<10x8x128xf32, #tpu.memory_space<vmem>>, vector<2x8x128xf32>
    %29 = arith.mulf %15, %15 : vector<2x1x8x128xf32>
    %cst_26 = arith.constant dense<0.000000e+00> : vector<2x8x128xf32>
    %30 = vector.multi_reduction <add>, %29, %cst_26 [1] : vector<2x1x8x128xf32> to vector<2x8x128xf32>
    %31 = arith.addf %28, %30 : vector<2x8x128xf32>
    %c4_27 = arith.constant 4 : index
    %c0_28 = arith.constant 0 : index
    %c0_29 = arith.constant 0 : index
    %32 = vector.load %arg4[%c4_27, %c0_28, %c0_29] : memref<10x8x128xf32, #tpu.memory_space<vmem>>, vector<2x8x128xf32>
    tpu.vector_store %arg4[%c4_27, %c0_28, %c0_29], %31 {strides = array<i32>} : memref<10x8x128xf32, #tpu.memory_space<vmem>>, vector<2x8x128xf32>,
    %c6 = arith.constant 6 : index
    %c0_30 = arith.constant 0 : index
    %c0_31 = arith.constant 0 : index
    %33 = vector.load %arg4[%c6, %c0_30, %c0_31] : memref<10x8x128xf32, #tpu.memory_space<vmem>>, vector<2x8x128xf32>
    %34 = arith.mulf %19, %19 : vector<2x1x8x128xf32>
    %cst_32 = arith.constant dense<0.000000e+00> : vector<2x8x128xf32>
    %35 = vector.multi_reduction <add>, %34, %cst_32 [1] : vector<2x1x8x128xf32> to vector<2x8x128xf32>
    %36 = arith.addf %33, %35 : vector<2x8x128xf32>
    %c6_33 = arith.constant 6 : index
    %c0_34 = arith.constant 0 : index
    %c0_35 = arith.constant 0 : index
    %37 = vector.load %arg4[%c6_33, %c0_34, %c0_35] : memref<10x8x128xf32, #tpu.memory_space<vmem>>, vector<2x8x128xf32>
    tpu.vector_store %arg4[%c6_33, %c0_34, %c0_35], %36 {strides = array<i32>} : memref<10x8x128xf32, #tpu.memory_space<vmem>>, vector<2x8x128xf32>,
    %c8 = arith.constant 8 : index
    %c0_36 = arith.constant 0 : index
    %c0_37 = arith.constant 0 : index
    %38 = vector.load %arg4[%c8, %c0_36, %c0_37] : memref<10x8x128xf32, #tpu.memory_space<vmem>>, vector<2x8x128xf32>
    %39 = arith.mulf %15, %19 : vector<2x1x8x128xf32>
    %cst_38 = arith.constant dense<0.000000e+00> : vector<2x8x128xf32>
    %40 = vector.multi_reduction <add>, %39, %cst_38 [1] : vector<2x1x8x128xf32> to vector<2x8x128xf32>
    %41 = arith.addf %38, %40 : vector<2x8x128xf32>
    %c8_39 = arith.constant 8 : index
    %c0_40 = arith.constant 0 : index
    %c0_41 = arith.constant 0 : index
    %42 = vector.load %arg4[%c8_39, %c0_40, %c0_41] : memref<10x8x128xf32, #tpu.memory_space<vmem>>, vector<2x8x128xf32>
    tpu.vector_store %arg4[%c8_39, %c0_40, %c0_41], %41 {strides = array<i32>} : memref<10x8x128xf32, #tpu.memory_space<vmem>>, vector<2x8x128xf32>,
    return
  }
  func.func @transform_0(%arg0: i32, %arg1: i32) -> (i32, i32, i32, i32) {
    %c1_i32 = arith.constant 1 : i32
    %0 = arith.muli %arg0, %c1_i32 : i32
    %1 = arith.addi %0, %arg1 : i32
    %c0_i32 = arith.constant 0 : i32
    %2 = arith.minsi %1, %c0_i32 : i32
    %c0_i32_0 = arith.constant 0 : i32
    %c0_i32_1 = arith.constant 0 : i32
    %c0_i32_2 = arith.constant 0 : i32
    %c0_i32_3 = arith.constant 0 : i32
    return %c0_i32_0, %2, %c0_i32_1, %c0_i32_2 : i32, i32, i32, i32
  }
  func.func @transform_1(%arg0: i32, %arg1: i32) -> (i32, i32, i32, i32) {
    %c1_i32 = arith.constant 1 : i32
    %0 = arith.muli %arg0, %c1_i32 : i32
    %1 = arith.addi %0, %arg1 : i32
    %c0_i32 = arith.constant 0 : i32
    %2 = arith.minsi %1, %c0_i32 : i32
    %c0_i32_0 = arith.constant 0 : i32
    %c0_i32_1 = arith.constant 0 : i32
    %c0_i32_2 = arith.constant 0 : i32
    %c0_i32_3 = arith.constant 0 : i32
    return %c0_i32_0, %2, %c0_i32_1, %c0_i32_2 : i32, i32, i32, i32
  }
  func.func @transform_2(%arg0: i32, %arg1: i32) -> (i32, i32, i32) {
    %c0_i32 = arith.constant 0 : i32
    %c0_i32_0 = arith.constant 0 : i32
    %c0_i32_1 = arith.constant 0 : i32
    return %arg0, %c0_i32, %c0_i32_0 : i32, i32, i32
  }
}

</mosaic_0001>

<llo_original>
// kernel: tpu_custom_call.1
$region0: #{tpu_custom_call.1}
  #allocation0 [shape = 'u32[]', space=smem, size = 0x4, offset = 0x4, fixed_abs, tag = 'smem constant byte address 0x4 - core index']
  #allocation1 [shape = 'u32[144,128]{1,0:T(1,128)}', space=vmem, size = 0x12000, scoped, tag = 'internal scratch']
  %s0 = inlined_call_operand.hbm [shape: f32[2,1,8,128], index: 0, kind: input, shape index: {}]
  %s1 = inlined_call_operand.hbm [shape: f32[2,1,8,128], index: 1, kind: input, shape index: {}]
  %s2 = inlined_call_operand.hbm [shape: f32[20,8,128], index: 2, kind: output, shape index: {}]
  %s3 = sld [smem:[#allocation0]]
  $region53: #{tpu_custom_call.1} parent=0
    _
  %s5 = ssub.s32 1, %s3
  %s6 = scalar_select 0, %s5, %s3
  $region1: #{tpu_custom_call.1} parent=0
    #allocation2 [shape = 'u8[16384]{0}', space=vmem, size = 0x4000, scoped, tag = 'input window, operand 0']
    #allocation3 [shape = 's32[2]{0}', space=sflag, size = 0x8, scoped, tag = 'scoped memory for tpu_custom_call.1']
    #allocation4 [shape = 's32[2]{0}', space=sflag, size = 0x8, scoped, tag = 'scoped memory for tpu_custom_call.1']
    #allocation5 [shape = 'u8[16384]{0}', space=vmem, size = 0x4000, scoped, tag = 'input window, operand 1']
    #allocation6 [shape = 's32[2]{0}', space=sflag, size = 0x8, scoped, tag = 'scoped memory for tpu_custom_call.1']
    #allocation7 [shape = 'u8[81920]{0}', space=vmem, size = 0x14000, scoped, tag = 'output window, operand 0']
    %7 = vsyncpa [#allocation3], 0
    %s8 = scalar_lea.sflag [#allocation3], 1
    %9 = vsyncpa %s8, 0
    %10 = vsyncpa [#allocation6], 0
    %s11 = scalar_lea.sflag [#allocation6], 1
    %12 = vsyncpa %s11, 0
    %13 = vsyncpa [#allocation4], 0
    %s14 = scalar_lea.sflag [#allocation4], 1
    %15 = vsyncpa %s14, 0
    loop: start=0, step=1, limit=4
    $region2: #{tpu_custom_call.1} parent=1 // loop_pre_header
      _
    $region3: #{tpu_custom_call.1} parent=1 // loop_header
      %s17 = sphi 0, %s21
      %p18 = scmp.ge.s32.totalorder %s17, 4
      %s24 = sphi 0, %s36
      %s25 = sphi 0, %s32
      %s26 = sphi 0, %s24
      %s27 = sphi 0, %s25
      %s28 = sphi 0, %s26
      %s29 = sphi 0, %s27
      %s45 = sphi 0, %s47
      %s48 = sphi 0, %s45
      %s49 = sphi 0, %s48
      %s65 = sphi 0, %s49
      %s77 = sphi 0, %s79
      %s80 = sphi 0, %s77
      %s81 = sphi 0, %s80
      %s97 = sphi 0, %s81
      %s103 = sphi 0, %s105
      %s106 = sphi 0, %s103
      %s107 = sphi 0, %s106
      %s123 = sphi 0, %s107
    $region4: #{tpu_custom_call.1} parent=1 // loop_header_branch
      %20 = sbr.rel (%p18) target = $region8
    $region5: #{tpu_custom_call.1} parent=1 // loop_body
      %s22 = ssub.s32 %s17, 1
      %s23 = ssub.s32 %s17, 2
      %s30 = sadd.s32 1, %s25
      %p31 = scmp.ge.s32.totalorder %s30, 1
      %s32 = scalar_select %p31, 0, %s30
      %s33 = sadd.s32 1, %s24
      %s34 = scalar_select %p31, %s33, %s24
      %p35 = scmp.ge.s32.totalorder %s34, 2
      %s36 = scalar_select %p35, 0, %s34
      %s37 = sadd.s32 %s24, %s25
      %p38 = scmp.lt.s32.totalorder %s37, 0
      %s39 = scalar_select %p38, %s37, 0
      %s40 = sadd.s32 %s36, %s32
      %p41 = scmp.lt.s32.totalorder %s40, 0
      %s42 = scalar_select %p41, %s40, 0
      %s43 = ssub.s32 %s39, %s42
      %p44 = scmp.eq.s32.totalorder %s43, 0
      %s46 = sadd.s32 %s45, 1
      %s47 = scalar_select %p44, %s45, %s46
      %p50 = pneg %p44
      %p51 = scmp.eq.s32.totalorder %s17, 1
      %p52 = por %p50, %p51
      %p53 = scmp.ne.s32.totalorder %s45, %s48
      %p54 = scmp.eq.s32.totalorder %s17, 0
      %p55 = por %p53, %p54
      %p56 = scmp.ne.s32.totalorder %s45, %s48
      %p57 = scmp.eq.s32.totalorder %s22, 1
      %p58 = por %p56, %p57
      %p59 = scmp.ne.s32.totalorder %s48, %s49
      %p60 = scmp.eq.s32.totalorder %s22, 0
      %p61 = por %p59, %p60
      %p62 = scmp.ne.s32.totalorder %s48, %s49
      %p63 = scmp.eq.s32.totalorder %s23, 1
      %p64 = por %p62, %p63
      %p66 = scmp.ne.s32.totalorder %s49, %s65
      %p67 = scmp.eq.s32.totalorder %s23, 0
      %p68 = por %p66, %p67
      %s69 = sadd.s32 %s24, %s25
      %p70 = scmp.lt.s32.totalorder %s69, 0
      %s71 = scalar_select %p70, %s69, 0
      %s72 = sadd.s32 %s36, %s32
      %p73 = scmp.lt.s32.totalorder %s72, 0
      %s74 = scalar_select %p73, %s72, 0
      %s75 = ssub.s32 %s71, %s74
      %p76 = scmp.eq.s32.totalorder %s75, 0
      %s78 = sadd.s32 %s77, 1
      %s79 = scalar_select %p76, %s77, %s78
      %p82 = pneg %p76
      %p83 = scmp.eq.s32.totalorder %s17, 1
      %p84 = por %p82, %p83
      %p85 = scmp.ne.s32.totalorder %s77, %s80
      %p86 = scmp.eq.s32.totalorder %s17, 0
      %p87 = por %p85, %p86
      %p88 = scmp.ne.s32.totalorder %s77, %s80
      %p89 = scmp.eq.s32.totalorder %s22, 1
      %p90 = por %p88, %p89
      %p91 = scmp.ne.s32.totalorder %s80, %s81
      %p92 = scmp.eq.s32.totalorder %s22, 0
      %p93 = por %p91, %p92
      %p94 = scmp.ne.s32.totalorder %s80, %s81
      %p95 = scmp.eq.s32.totalorder %s23, 1
      %p96 = por %p94, %p95
      %p98 = scmp.ne.s32.totalorder %s81, %s97
      %p99 = scmp.eq.s32.totalorder %s23, 0
      %p100 = por %p98, %p99
      %s101 = ssub.s32 %s24, %s36
      %p102 = scmp.eq.s32.totalorder %s101, 0
      %s104 = sadd.s32 %s103, 1
      %s105 = scalar_select %p102, %s103, %s104
      %p108 = pneg %p102
      %p109 = scmp.eq.s32.totalorder %s17, 1
      %p110 = por %p108, %p109
      %p111 = scmp.ne.s32.totalorder %s103, %s106
      %p112 = scmp.eq.s32.totalorder %s17, 0
      %p113 = por %p111, %p112
      %p114 = scmp.ne.s32.totalorder %s103, %s106
      %p115 = scmp.eq.s32.totalorder %s22, 1
      %p116 = por %p114, %p115
      %p117 = scmp.ne.s32.totalorder %s106, %s107
      %p118 = scmp.eq.s32.totalorder %s22, 0
      %p119 = por %p117, %p118
      %p120 = scmp.ne.s32.totalorder %s106, %s107
      %p121 = scmp.eq.s32.totalorder %s23, 1
      %p122 = por %p120, %p121
      %p124 = scmp.ne.s32.totalorder %s107, %s123
      %p125 = scmp.eq.s32.totalorder %s23, 0
      %p126 = por %p124, %p125
      %p127 = scmp.le.s32.totalorder 1, %s17
      %p128 = scmp.lt.s32.totalorder %s17, 3
      %p129 = pnand %p127, %p128
      %p130 = pneg %p129
      // Predicated region
      $region9: #{tpu_custom_call.1} parent=5 // pred_check
        _
      $region10: #{tpu_custom_call.1} parent=5 // pred_check_branch
        %132 = sbr.rel (%p129) target = $region12
      $region11: #{tpu_custom_call.1} parent=5 // pred_region
        %s133 = ssub.s32 %s17, 1
      $region12: #{tpu_custom_call.1} parent=5 // pred_fallthru
        _
      %p134 = scmp.lt.s32.totalorder %s17, 2
      // Predicated region
      $region13: #{tpu_custom_call.1} parent=5 // pred_check
        %p135 = pneg %p134
      $region14: #{tpu_custom_call.1} parent=5 // pred_check_branch
        %137 = sbr.rel (%p135) target = $region16
      $region15: #{tpu_custom_call.1} parent=5 // pred_region
        // Predicated region
        $region17: #{tpu_custom_call.1} parent=15 // pred_check
          %p138 = pneg %p55
        $region18: #{tpu_custom_call.1} parent=15 // pred_check_branch
          %140 = sbr.rel (%p138) target = $region20
        $region19: #{tpu_custom_call.1} parent=15 // pred_region
          %s141 = sand.u32 %s45, 1
          %s142 = scalar_lea.sflag [#allocation3], %s141
          %s143 = sand.u32 %s45, 1
          %s144 = smul.addr %s143, 16
          %s145 = scalar_lea.vmem [#allocation2], %s144
          %s146 = sadd.s32 %s24, %s25
          %p147 = scmp.lt.s32.totalorder %s146, 0
          %s148 = scalar_select %p147, %s146, 0
          %s150 = ssub.s32 256, 256
          %151 = vsyncadd %s142, %s150
          %s152 = smul.addr %s148, 128
          %s153 = scalar_lea.hbm %s0, %s152
          %s154 = sshll.u32 %s145, 4
          %s155 = int_to_ptr.vmem [resolvable:$true] %s154
          %160 = dma.hbm_to_vmem [thread:$0]  %s153, 256, %s155, %s142, 128, 128, 8
        $region20: #{tpu_custom_call.1} parent=15 // pred_fallthru
          _
        // Predicated region
        $region21: #{tpu_custom_call.1} parent=15 // pred_check
          %p161 = pneg %p87
        $region22: #{tpu_custom_call.1} parent=15 // pred_check_branch
          %163 = sbr.rel (%p161) target = $region24
        $region23: #{tpu_custom_call.1} parent=15 // pred_region
          %s164 = sand.u32 %s77, 1
          %s165 = scalar_lea.sflag [#allocation6], %s164
          %s166 = sand.u32 %s77, 1
          %s167 = smul.addr %s166, 16
          %s168 = scalar_lea.vmem [#allocation5], %s167
          %s169 = sadd.s32 %s24, %s25
          %p170 = scmp.lt.s32.totalorder %s169, 0
          %s171 = scalar_select %p170, %s169, 0
          %s173 = ssub.s32 256, 256
          %174 = vsyncadd %s165, %s173
          %s175 = smul.addr %s171, 128
          %s176 = scalar_lea.hbm %s1, %s175
          %s177 = sshll.u32 %s168, 4
          %s178 = int_to_ptr.vmem [resolvable:$true] %s177
          %183 = dma.hbm_to_vmem [thread:$0]  %s176, 256, %s178, %s165, 128, 128, 8
        $region24: #{tpu_custom_call.1} parent=15 // pred_fallthru
          _
      $region16: #{tpu_custom_call.1} parent=5 // pred_fallthru
        _
      %p184 = scmp.le.s32.totalorder 1, %s17
      %p185 = scmp.lt.s32.totalorder %s17, 3
      %p186 = pnand %p184, %p185
      %p187 = pneg %p186
      // Predicated region
      $region25: #{tpu_custom_call.1} parent=5 // pred_check
        _
      $region26: #{tpu_custom_call.1} parent=5 // pred_check_branch
        %189 = sbr.rel (%p186) target = $region28
      $region27: #{tpu_custom_call.1} parent=5 // pred_region
        %s190 = ssub.s32 %s17, 1
        %s191 = sand.u32 %s48, 1
        %s192 = scalar_lea.sflag [#allocation3], %s191
        %s193 = sand.u32 %s48, 1
        %s194 = smul.addr %s193, 16
        %s195 = scalar_lea.vmem [#allocation2], %s194
        // Predicated region
        $region29: #{tpu_custom_call.1} parent=27 // pred_check
          %p196 = pneg %p61
        $region30: #{tpu_custom_call.1} parent=27 // pred_check_branch
          %198 = sbr.rel (%p196) target = $region32
        $region31: #{tpu_custom_call.1} parent=27 // pred_region
          %199 = dma.done %s192, 256
        $region32: #{tpu_custom_call.1} parent=27 // pred_fallthru
          _
        %s200 = sand.u32 %s80, 1
        %s201 = scalar_lea.sflag [#allocation6], %s200
        %s202 = sand.u32 %s80, 1
        %s203 = smul.addr %s202, 16
        %s204 = scalar_lea.vmem [#allocation5], %s203
        // Predicated region
        $region33: #{tpu_custom_call.1} parent=27 // pred_check
          %p205 = pneg %p93
        $region34: #{tpu_custom_call.1} parent=27 // pred_check_branch
          %207 = sbr.rel (%p205) target = $region36
        $region35: #{tpu_custom_call.1} parent=27 // pred_region
          %208 = dma.done %s201, 256
        $region36: #{tpu_custom_call.1} parent=27 // pred_fallthru
          _
        %s209 = sand.u32 %s48, 1
        %s210 = scalar_lea.sflag [#allocation3], %s209
        %s211 = sand.u32 %s48, 1
        %s212 = smul.addr %s211, 16
        %s213 = scalar_lea.vmem [#allocation2], %s212
        %p214 = pneg %p61
        %p215 = pneg %p58
        %s216 = sand.u32 %s80, 1
        %s217 = scalar_lea.sflag [#allocation6], %s216
        %s218 = sand.u32 %s80, 1
        %s219 = smul.addr %s218, 16
        %s220 = scalar_lea.vmem [#allocation5], %s219
        %p221 = pneg %p93
        %p222 = pneg %p90
        %p223 = pneg %p119
        %p224 = pneg %p116
        %s225 = sand.u32 %s106, 1
        %s226 = scalar_lea.sflag [#allocation4], %s225
        %s227 = sand.u32 %s106, 1
        %s228 = smul.addr %s227, 80
        %s229 = scalar_lea.vmem [#allocation7], %s228
        %s230 = sadd.s32 %s26, %s27
        %p231 = scmp.lt.s32.totalorder %s230, 0
        %s232 = scalar_select %p231, %s230, 0
        %s233 = sadd.s32 %s26, %s27
        %p234 = scmp.lt.s32.totalorder %s233, 0
        %s235 = scalar_select %p234, %s233, 0
        %s236 = smul.u32 10, %s26
        %p237 = scmp.eq.s32.totalorder %s27, 0
        // Predicated region
        $region37: #{tpu_custom_call.1} parent=27 // pred_check
          %p238 = pneg %p237
        $region38: #{tpu_custom_call.1} parent=27 // pred_check_branch
          %240 = sbr.rel (%p238) target = $region40
        $region39: #{tpu_custom_call.1} parent=27 // pred_region
          %241 = vst [vmem:[%s229] sm:$0xff] 0.0
          %242 = vst [vmem:[%s229 + $0x8] sm:$0xff] 0.0
          %243 = vst [vmem:[%s229 + $0x10] sm:$0xff] 0.0
          %244 = vst [vmem:[%s229 + $0x18] sm:$0xff] 0.0
          %245 = vst [vmem:[%s229 + $0x20] sm:$0xff] 0.0
          %246 = vst [vmem:[%s229 + $0x28] sm:$0xff] 0.0
          %247 = vst [vmem:[%s229 + $0x30] sm:$0xff] 0.0
          %248 = vst [vmem:[%s229 + $0x38] sm:$0xff] 0.0
          %249 = vst [vmem:[%s229 + $0x40] sm:$0xff] 0.0
          %250 = vst [vmem:[%s229 + $0x48] sm:$0xff] 0.0
        $region40: #{tpu_custom_call.1} parent=27 // pred_fallthru
          _
        %v251 = vld [vmem:[%s195] sm:$0xff]
        %v252 = vld [vmem:[%s195 + $0x8] sm:$0xff]
        %v253 = vld [vmem:[%s204] sm:$0xff]
        %v254 = vld [vmem:[%s204 + $0x8] sm:$0xff]
        %s255 = sadd.s32 %s26, %s27
        %s256 = ssub.s32 1, %s255
        %v257 = vstv %s256
        %vm258 = vcmp.gt.s32.totalorder %v257, 0
        %v259 = vsel %vm258, 1, 0
        %vm260 = vcmp.eq.s32.totalorder %v259, 1
        %v261 = vsel %vm260, %v251, 0.0
        %v262 = vsel %vm260, %v252, 0.0
        %v263 = vsel %vm260, %v253, 0.0
        %v264 = vsel %vm260, %v254, 0.0
        %v265 = vld [vmem:[%s229] sm:$0xff]
        %v266 = vld [vmem:[%s229 + $0x8] sm:$0xff]
        %v267 = vadd.f32 %v261, 0.0
        %v268 = vadd.f32 %v262, 0.0
        %v269 = vadd.f32 %v265, %v267
        %v270 = vadd.f32 %v266, %v268
        %271 = vst [vmem:[%s229] sm:$0xff] %v269
        %272 = vst [vmem:[%s229 + $0x8] sm:$0xff] %v270
        %s273 = scalar_lea.vmem %s229, 16 [#allocation7]
        %v274 = vld [vmem:[%s273] sm:$0xff]
        %v275 = vld [vmem:[%s273 + $0x8] sm:$0xff]
        %v276 = vadd.f32 %v263, 0.0
        %v277 = vadd.f32 %v264, 0.0
        %v278 = vadd.f32 %v274, %v276
        %v279 = vadd.f32 %v275, %v277
        %280 = vst [vmem:[%s273] sm:$0xff] %v278
        %281 = vst [vmem:[%s273 + $0x8] sm:$0xff] %v279
        %s282 = scalar_lea.vmem %s229, 32 [#allocation7]
        %v283 = vld [vmem:[%s282] sm:$0xff]
        %v284 = vld [vmem:[%s282 + $0x8] sm:$0xff]
        %v285 = vmul.f32 %v261, %v261
        %v286 = vmul.f32 %v262, %v262
        %v287 = vadd.f32 %v285, 0.0
        %v288 = vadd.f32 %v286, 0.0
        %v289 = vadd.f32 %v283, %v287
        %v290 = vadd.f32 %v284, %v288
        %291 = vst [vmem:[%s282] sm:$0xff] %v289
        %292 = vst [vmem:[%s282 + $0x8] sm:$0xff] %v290
        %s293 = scalar_lea.vmem %s229, 48 [#allocation7]
        %v294 = vld [vmem:[%s293] sm:$0xff]
        %v295 = vld [vmem:[%s293 + $0x8] sm:$0xff]
        %v296 = vmul.f32 %v263, %v263
        %v297 = vmul.f32 %v264, %v264
        %v298 = vadd.f32 %v296, 0.0
        %v299 = vadd.f32 %v297, 0.0
        %v300 = vadd.f32 %v294, %v298
        %v301 = vadd.f32 %v295, %v299
        %302 = vst [vmem:[%s293] sm:$0xff] %v300
        %303 = vst [vmem:[%s293 + $0x8] sm:$0xff] %v301
        %s304 = scalar_lea.vmem %s229, 64 [#allocation7]
        %v305 = vld [vmem:[%s304] sm:$0xff]
        %v306 = vld [vmem:[%s304 + $0x8] sm:$0xff]
        %v307 = vmul.f32 %v261, %v263
        %v308 = vmul.f32 %v262, %v264
        %v309 = vadd.f32 %v307, 0.0
        %v310 = vadd.f32 %v308, 0.0
        %v311 = vadd.f32 %v305, %v309
        %v312 = vadd.f32 %v306, %v310
        %313 = vst [vmem:[%s304] sm:$0xff] %v311
        %314 = vst [vmem:[%s304 + $0x8] sm:$0xff] %v312
        %s315 = sand.u32 %s106, 1
        %s316 = scalar_lea.sflag [#allocation4], %s315
        %s317 = sand.u32 %s106, 1
        %s318 = smul.addr %s317, 80
        %s319 = scalar_lea.vmem [#allocation7], %s318
        // Predicated region
        $region41: #{tpu_custom_call.1} parent=27 // pred_check
          %p320 = pneg %p116
        $region42: #{tpu_custom_call.1} parent=27 // pred_check_branch
          %322 = sbr.rel (%p320) target = $region44
        $region43: #{tpu_custom_call.1} parent=27 // pred_region
          %s323 = smul.u32 10, %s26
          %s325 = ssub.s32 1280, 1280
          %326 = vsyncadd %s316, %s325
          %s327 = smul.addr %s323, 128
          %s328 = scalar_lea.hbm %s2, %s327
          %s329 = sshll.u32 %s319, 4
          %s330 = int_to_ptr.vmem [resolvable:$true] %s329
          %335 = dma.vmem_to_hbm [thread:$0]  %s330, 1280, %s328, %s316, 128, 128, 8
        $region44: #{tpu_custom_call.1} parent=27 // pred_fallthru
          _
      $region28: #{tpu_custom_call.1} parent=5 // pred_fallthru
        _
      %p336 = scmp.le.s32.totalorder 2, %s17
      // Predicated region
      $region45: #{tpu_custom_call.1} parent=5 // pred_check
        %p337 = pneg %p336
      $region46: #{tpu_custom_call.1} parent=5 // pred_check_branch
        %339 = sbr.rel (%p337) target = $region48
      $region47: #{tpu_custom_call.1} parent=5 // pred_region
        %s340 = ssub.s32 %s17, 2
        // Predicated region
        $region49: #{tpu_custom_call.1} parent=47 // pred_check
          %p341 = pneg %p122
        $region50: #{tpu_custom_call.1} parent=47 // pred_check_branch
          %343 = sbr.rel (%p341) target = $region52
        $region51: #{tpu_custom_call.1} parent=47 // pred_region
          %s344 = sand.u32 %s107, 1
          %s345 = scalar_lea.sflag [#allocation4], %s344
          %s346 = sand.u32 %s107, 1
          %s347 = smul.addr %s346, 80
          %s348 = scalar_lea.vmem [#allocation7], %s347
          %349 = dma.done %s345, 1280
        $region52: #{tpu_custom_call.1} parent=47 // pred_fallthru
          _
      $region48: #{tpu_custom_call.1} parent=5 // pred_fallthru
        _
    $region6: #{tpu_custom_call.1} parent=1 // loop_footer
      %s21 = sadd.s32 1, %s17
    $region7: #{tpu_custom_call.1} parent=1 // loop_footer_branch
      %16 = sbr.rel target = $region3
    $region8: #{tpu_custom_call.1} parent=1 // loop_exit
      _
    %350 = vsyncpa [#allocation3], 1
    %s351 = scalar_lea.sflag [#allocation3], 1
    %352 = vsyncpa %s351, 1
    %353 = vsyncpa [#allocation6], 1
    %s354 = scalar_lea.sflag [#allocation6], 1
    %355 = vsyncpa %s354, 1
    %356 = vsyncpa [#allocation4], 1
    %s357 = scalar_lea.sflag [#allocation4], 1
    %358 = vsyncpa %s357, 1

</llo_original>
